<compile_context>
chip_gen: v7x
topology: tpu7x:2x2x1
jax: 0.10.0
libtpu: 0.0.40
codegen_flags: <defaults>
</compile_context>

<pallas_src>
import functools
import math

import numpy as np
import jax
import jax.numpy as jnp
from jax.experimental import pallas as pl
from jax.experimental.pallas import tpu as pltpu


def _focal_loss_kernel(x_ref, t_ref, out_ref, *, gamma, eps):
    i = pl.program_id(0)

    @pl.when(i == 0)
    def _init():
        out_ref[...] = jnp.zeros_like(out_ref)

    x = x_ref[...].astype(jnp.float32)                       # [TM, C]
    t = t_ref[...].astype(jnp.float32)                       # [TM, C]

    # Numerically stable softmax along the lane (class) axis.
    m = jnp.max(x, axis=-1, keepdims=True)                   # [TM, 1]  XLU
    xs = x - m                                                # [TM, C]  VALU
    e = jnp.exp(xs)                                           # [TM, C]  EUP (only per-element transcendental)
    denom = jnp.sum(e, axis=-1, keepdims=True)                # [TM, 1]  XLU
    inv_denom = 1.0 / denom                                   # [TM, 1]  EUP (per row, not per element)
    log_denom = jnp.log(denom)                                # [TM, 1]  EUP (per row)

    p = jnp.clip(e * inv_denom, eps, 1.0 - eps)               # clamped softmax probability
    # log of the clamped probability; clipping in log-space is equivalent (log is monotone)
    logp = jnp.clip(xs - log_denom, math.log(eps), math.log1p(-eps))

    # focal weight (1 - p) ** gamma  (gamma=2 default -> two VALU multiplies, no pow)
    one_minus_p = 1.0 - p
    if float(gamma) == float(int(gamma)) and int(gamma) >= 0:
        w = jnp.ones_like(p)
        for _ in range(int(gamma)):
            w = w * one_minus_p
    else:
        w = jnp.exp(jnp.float32(gamma) * jnp.log(one_minus_p))  # one_minus_p >= eps > 0

    loss = (-t) * logp * w                                     # [TM, C]

    # Two single-axis reductions (lane then sublane) -> (1,1), accumulated into the
    # resident output block across the grid.
    row_sum = jnp.sum(loss, axis=-1, keepdims=True)            # [TM, 1]
    out_ref[...] += jnp.sum(row_sum, axis=0, keepdims=True)    # [1, 1]


def _round_up(n, m):
    return (n + m - 1) // m * m


@functools.partial(jax.jit, static_argnames=("gamma", "eps", "block_rows"))
def focal_loss(x, target, gamma=2.0, eps=1e-7, block_rows=None):
    """Pallas implementation of FocalLossV2.forward (returns a scalar)."""
    C = x.shape[-1]
    x2 = x.reshape(-1, C).astype(jnp.float32)
    t2 = target.reshape(-1, C).astype(jnp.float32)
    N = x2.shape[0]

    if block_rows is None:
        block_rows = min(256, _round_up(N, 8))
    tm = _round_up(int(block_rows), 8)                 # sublane-aligned row tile
    n_pad = _round_up(max(N, 1), tm)
    if n_pad != N:
        # zero-padded rows: softmax stays finite, zero target => zero loss contribution
        x2 = jnp.pad(x2, ((0, n_pad - N), (0, 0)))
        t2 = jnp.pad(t2, ((0, n_pad - N), (0, 0)))

    kernel = functools.partial(_focal_loss_kernel, gamma=float(gamma), eps=float(eps))
    out = pl.pallas_call(
        kernel,
        out_shape=jax.ShapeDtypeStruct((1, 1), jnp.float32),
        grid_spec=pltpu.PrefetchScalarGridSpec(
            num_scalar_prefetch=0,
            grid=(n_pad // tm,),
            in_specs=[
                pl.BlockSpec((tm, C), lambda i: (i, 0)),
                pl.BlockSpec((tm, C), lambda i: (i, 0)),
            ],
            out_specs=pl.BlockSpec((1, 1), lambda i: (0, 0)),
        ),
        compiler_params=pltpu.CompilerParams(
            dimension_semantics=("arbitrary",),        # reduction axis (output is an accumulator)
        ),
    )(x2, t2)
    return out[0, 0]


def focal_loss_ref(x, t, gamma=2.0, eps=1e-7):
    """Pure numpy mirror of the PyTorch forward (for verification)."""
    x = np.asarray(x, np.float64)
    t = np.asarray(t, np.float64)
    xm = x - x.max(axis=-1, keepdims=True)
    e = np.exp(xm)
    p = e / e.sum(axis=-1, keepdims=True)
    p = np.clip(p, eps, 1.0 - eps)
    loss = -t * np.log(p) * (1.0 - p) ** gamma
    return float(loss.sum())


if __name__ == "__main__":
    key = jax.random.PRNGKey(0)
    N, C = 16, 32
    k1, k2 = jax.random.split(key)
    logits = jax.random.normal(k1, (N, C), dtype=jnp.float32)
    cls = jax.random.randint(k2, (N,), 0, C)
    target = jax.nn.one_hot(cls, C, dtype=jnp.float32)

    # block_rows=8 -> grid of 2 tiles, exercising the cross-tile accumulation path.
    loss = focal_loss(logits, target, gamma=2.0, eps=1e-7, block_rows=8)
    jax.block_until_ready(loss)

    ref = focal_loss_ref(np.asarray(logits), np.asarray(target), gamma=2.0, eps=1e-7)
    assert np.isfinite(float(loss))
    np.testing.assert_allclose(float(loss), ref, rtol=1e-4, atol=1e-5)
    print("KERNEL_OK")
</pallas_src>

<mosaic_0001>
module attributes {stable_mosaic.version = 11 : i64} {
  func.func @_focal_loss_kernel(%arg0: i32, %arg1: memref<8x32xf32, #tpu.memory_space<vmem>>, %arg2: memref<8x32xf32, #tpu.memory_space<vmem>>, %arg3: memref<1x1xf32, #tpu.memory_space<vmem>>) attributes {dimension_semantics = [#tpu.dimension_semantics<arbitrary>], iteration_bounds = array<i64: 2>, scalar_prefetch = 0 : i64, scratch_operands = 0 : i64, tpu.core_type = #tpu.core_type<tc>, window_params = [{transform_indices = @transform_0, window_bounds = array<i64: 8, 32>}, {transform_indices = @transform_1, window_bounds = array<i64: 8, 32>}, {pipeline_mode = #tpu.pipeline_mode<synchronous>, transform_indices = @transform_2, window_bounds = array<i64: 1, 1>}]} {
    %c0_i32 = arith.constant 0 : i32
    %0 = arith.cmpi eq, %arg0, %c0_i32 : i32
    %1 = arith.extui %0 : i1 to i32
    %c0_i32_0 = arith.constant 0 : i32
    %2 = arith.cmpi ne, %1, %c0_i32_0 : i32
    scf.if %2 {
      %cst_19 = arith.constant 0.000000e+00 : f32
      %43 = vector.broadcast %cst_19 : f32 to vector<1x1xf32>
      %c0_20 = arith.constant 0 : index
      %c0_21 = arith.constant 0 : index
      %44 = vector.load %arg3[%c0_20, %c0_21] : memref<1x1xf32, #tpu.memory_space<vmem>>, vector<1x1xf32>
      tpu.vector_store %arg3[%c0_20, %c0_21], %43 {strides = array<i32>} : memref<1x1xf32, #tpu.memory_space<vmem>>, vector<1x1xf32>,
    } else {
    }
    %c0 = arith.constant 0 : index
    %c0_1 = arith.constant 0 : index
    %3 = vector.load %arg1[%c0, %c0_1] : memref<8x32xf32, #tpu.memory_space<vmem>>, vector<8x32xf32>
    %c0_2 = arith.constant 0 : index
    %c0_3 = arith.constant 0 : index
    %4 = vector.load %arg2[%c0_2, %c0_3] : memref<8x32xf32, #tpu.memory_space<vmem>>, vector<8x32xf32>
    %cst = arith.constant dense<0xFF800000> : vector<8xf32>
    %5 = vector.multi_reduction <maximumf>, %3, %cst [1] : vector<8x32xf32> to vector<8xf32>
    %6 = vector.shape_cast %5 : vector<8xf32> to vector<8x1xf32>
    %7 = vector.broadcast %6 : vector<8x1xf32> to vector<8x32xf32>
    %8 = arith.subf %3, %7 : vector<8x32xf32>
    %9 = math.exp %8 : vector<8x32xf32>
    %cst_4 = arith.constant dense<0.000000e+00> : vector<8xf32>
    %10 = vector.multi_reduction <add>, %9, %cst_4 [1] : vector<8x32xf32> to vector<8xf32>
    %11 = vector.shape_cast %10 : vector<8xf32> to vector<8x1xf32>
    %cst_5 = arith.constant 1.000000e+00 : f32
    %12 = vector.broadcast %cst_5 : f32 to vector<8x1xf32>
    %13 = arith.divf %12, %11 : vector<8x1xf32>
    %14 = math.log %11 : vector<8x1xf32>
    %15 = vector.broadcast %13 : vector<8x1xf32> to vector<8x32xf32>
    %16 = arith.mulf %9, %15 : vector<8x32xf32>
    %cst_6 = arith.constant 1.000000e-07 : f32
    %cst_7 = arith.constant 0.99999988 : f32
    %17 = vector.broadcast %cst_6 : f32 to vector<8x32xf32>
    %18 = arith.maximumf %17, %16 : vector<8x32xf32>
    %19 = vector.broadcast %cst_7 : f32 to vector<8x32xf32>
    %20 = arith.minimumf %19, %18 : vector<8x32xf32>
    %21 = vector.broadcast %14 : vector<8x1xf32> to vector<8x32xf32>
    %22 = arith.subf %8, %21 : vector<8x32xf32>
    %cst_8 = arith.constant -16.1180954 : f32
    %cst_9 = arith.constant -1.00000008E-7 : f32
    %23 = vector.broadcast %cst_8 : f32 to vector<8x32xf32>
    %24 = arith.maximumf %23, %22 : vector<8x32xf32>
    %25 = vector.broadcast %cst_9 : f32 to vector<8x32xf32>
    %26 = arith.minimumf %25, %24 : vector<8x32xf32>
    %cst_10 = arith.constant 1.000000e+00 : f32
    %27 = vector.broadcast %cst_10 : f32 to vector<8x32xf32>
    %28 = arith.subf %27, %20 : vector<8x32xf32>
    %cst_11 = arith.constant 1.000000e+00 : f32
    %29 = vector.broadcast %cst_11 : f32 to vector<8x32xf32>
    %30 = arith.mulf %29, %28 : vector<8x32xf32>
    %31 = arith.mulf %30, %28 : vector<8x32xf32>
    %cst_12 = arith.constant 0.000000e+00 : f32
    %32 = vector.broadcast %cst_12 : f32 to vector<8x32xf32>
    %33 = arith.subf %32, %4 : vector<8x32xf32>
    %34 = arith.mulf %33, %26 : vector<8x32xf32>
    %35 = arith.mulf %34, %31 : vector<8x32xf32>
    %cst_13 = arith.constant dense<0.000000e+00> : vector<8xf32>
    %36 = vector.multi_reduction <add>, %35, %cst_13 [1] : vector<8x32xf32> to vector<8xf32>
    %37 = vector.shape_cast %36 : vector<8xf32> to vector<8x1xf32>
    %c0_14 = arith.constant 0 : index
    %c0_15 = arith.constant 0 : index
    %38 = vector.load %arg3[%c0_14, %c0_15] : memref<1x1xf32, #tpu.memory_space<vmem>>, vector<1x1xf32>
    %cst_16 = arith.constant dense<0.000000e+00> : vector<1xf32>
    %39 = vector.multi_reduction <add>, %37, %cst_16 [0] : vector<8x1xf32> to vector<1xf32>
    %40 = vector.shape_cast %39 : vector<1xf32> to vector<1x1xf32>
    %41 = arith.addf %38, %40 : vector<1x1xf32>
    %c0_17 = arith.constant 0 : index
    %c0_18 = arith.constant 0 : index
    %42 = vector.load %arg3[%c0_17, %c0_18] : memref<1x1xf32, #tpu.memory_space<vmem>>, vector<1x1xf32>
    tpu.vector_store %arg3[%c0_17, %c0_18], %41 {strides = array<i32>} : memref<1x1xf32, #tpu.memory_space<vmem>>, vector<1x1xf32>,
    return
  }
  func.func @transform_0(%arg0: i32) -> (i32, i32) {
    %c0_i32 = arith.constant 0 : i32
    %c0_i32_0 = arith.constant 0 : i32
    return %arg0, %c0_i32 : i32, i32
  }
  func.func @transform_1(%arg0: i32) -> (i32, i32) {
    %c0_i32 = arith.constant 0 : i32
    %c0_i32_0 = arith.constant 0 : i32
    return %arg0, %c0_i32 : i32, i32
  }
  func.func @transform_2(%arg0: i32) -> (i32, i32) {
    %c0_i32 = arith.constant 0 : i32
    %c0_i32_0 = arith.constant 0 : i32
    %c0_i32_1 = arith.constant 0 : i32
    return %c0_i32, %c0_i32_0 : i32, i32
  }
}

</mosaic_0001>

<llo_original>
// kernel: focal_loss.1
$region0: #{focal_loss.1}
  #allocation0 [shape = 'u32[]', space=smem, size = 0x4, offset = 0x4, fixed_abs, tag = 'smem constant byte address 0x4 - core index']
  #allocation1 [shape = 'u32[144,128]{1,0:T(1,128)}', space=vmem, size = 0x12000, scoped, tag = 'internal scratch']
  %s0 = inlined_call_operand.hbm [shape: f32[16,32], index: 0, kind: input, shape index: {}]
  %s1 = inlined_call_operand.hbm [shape: f32[16,32], index: 1, kind: input, shape index: {}]
  %s2 = inlined_call_operand.hbm [shape: f32[1,1], index: 2, kind: output, shape index: {}]
  %s3 = sld [smem:[#allocation0]]
  $region53: #{focal_loss.1} parent=0
    _
  %s5 = ssub.s32 1, %s3
  %s6 = scalar_select 0, %s5, %s3
  $region1: #{focal_loss.1} parent=0
    #allocation2 [shape = 'u8[8192]{0}', space=vmem, size = 0x2000, scoped, tag = 'input window, operand 0']
    #allocation3 [shape = 's32[2]{0}', space=sflag, size = 0x8, scoped, tag = 'scoped memory for focal_loss.1']
    #allocation4 [shape = 's32[2]{0}', space=sflag, size = 0x8, scoped, tag = 'scoped memory for focal_loss.1']
    #allocation5 [shape = 'u8[8192]{0}', space=vmem, size = 0x2000, scoped, tag = 'input window, operand 1']
    #allocation6 [shape = 's32[2]{0}', space=sflag, size = 0x8, scoped, tag = 'scoped memory for focal_loss.1']
    #allocation7 [shape = 'u8[512]{0}', space=vmem, size = 0x400, scoped, tag = 'output window, operand 0, single buffered']
    %7 = vsyncpa [#allocation3], 0
    %s8 = scalar_lea.sflag [#allocation3], 1
    %9 = vsyncpa %s8, 0
    %10 = vsyncpa [#allocation6], 0
    %s11 = scalar_lea.sflag [#allocation6], 1
    %12 = vsyncpa %s11, 0
    %13 = vsyncpa [#allocation4], 0
    loop: start=0, step=1, limit=4
    $region2: #{focal_loss.1} parent=1 // loop_pre_header
      _
    $region3: #{focal_loss.1} parent=1 // loop_header
      %s15 = sphi 0, %s19
      %p16 = scmp.ge.s32.totalorder %s15, 4
      %s25 = sphi 0, %s27
      %s28 = sphi 0, %s25
      %s29 = sphi 0, %s28
      %s45 = sphi 0, %s29
      %s51 = sphi 0, %s53
      %s54 = sphi 0, %s51
      %s55 = sphi 0, %s54
      %s71 = sphi 0, %s55
      %s75 = sphi 0, %s75
      %s77 = sphi 0, %s75
      %s78 = sphi 0, %s77
      %s92 = sphi 0, %s78
    $region4: #{focal_loss.1} parent=1 // loop_header_branch
      %18 = sbr.rel (%p16) target = $region8
    $region5: #{focal_loss.1} parent=1 // loop_body
      %s20 = ssub.s32 %s15, 1
      %s21 = ssub.s32 %s15, 2
      %s22 = sadd.s32 %s15, 1
      %s23 = ssub.s32 %s15, %s22
      %p24 = scmp.eq.s32.totalorder %s23, 0
      %s26 = sadd.s32 %s25, 1
      %s27 = scalar_select %p24, %s25, %s26
      %p30 = pneg %p24
      %p31 = scmp.eq.s32.totalorder %s15, 1
      %p32 = por %p30, %p31
      %p33 = scmp.ne.s32.totalorder %s25, %s28
      %p34 = scmp.eq.s32.totalorder %s15, 0
      %p35 = por %p33, %p34
      %p36 = scmp.ne.s32.totalorder %s25, %s28
      %p37 = scmp.eq.s32.totalorder %s20, 1
      %p38 = por %p36, %p37
      %p39 = scmp.ne.s32.totalorder %s28, %s29
      %p40 = scmp.eq.s32.totalorder %s20, 0
      %p41 = por %p39, %p40
      %p42 = scmp.ne.s32.totalorder %s28, %s29
      %p43 = scmp.eq.s32.totalorder %s21, 1
      %p44 = por %p42, %p43
      %p46 = scmp.ne.s32.totalorder %s29, %s45
      %p47 = scmp.eq.s32.totalorder %s21, 0
      %p48 = por %p46, %p47
      %s49 = ssub.s32 %s15, %s22
      %p50 = scmp.eq.s32.totalorder %s49, 0
      %s52 = sadd.s32 %s51, 1
      %s53 = scalar_select %p50, %s51, %s52
      %p56 = pneg %p50
      %p57 = scmp.eq.s32.totalorder %s15, 1
      %p58 = por %p56, %p57
      %p59 = scmp.ne.s32.totalorder %s51, %s54
      %p60 = scmp.eq.s32.totalorder %s15, 0
      %p61 = por %p59, %p60
      %p62 = scmp.ne.s32.totalorder %s51, %s54
      %p63 = scmp.eq.s32.totalorder %s20, 1
      %p64 = por %p62, %p63
      %p65 = scmp.ne.s32.totalorder %s54, %s55
      %p66 = scmp.eq.s32.totalorder %s20, 0
      %p67 = por %p65, %p66
      %p68 = scmp.ne.s32.totalorder %s54, %s55
      %p69 = scmp.eq.s32.totalorder %s21, 1
      %p70 = por %p68, %p69
      %p72 = scmp.ne.s32.totalorder %s55, %s71
      %p73 = scmp.eq.s32.totalorder %s21, 0
      %p74 = por %p72, %p73
      %s76 = sadd.s32 %s75, 1
      %p79 = scmp.eq.s32.totalorder %s15, 1
      %p80 = scmp.ne.s32.totalorder %s75, %s77
      %p81 = scmp.eq.s32.totalorder %s15, 0
      %p82 = por %p80, %p81
      %p83 = scmp.ne.s32.totalorder %s75, %s77
      %p84 = scmp.eq.s32.totalorder %s20, 1
      %p85 = por %p83, %p84
      %p86 = scmp.ne.s32.totalorder %s77, %s78
      %p87 = scmp.eq.s32.totalorder %s20, 0
      %p88 = por %p86, %p87
      %p89 = scmp.ne.s32.totalorder %s77, %s78
      %p90 = scmp.eq.s32.totalorder %s21, 1
      %p91 = por %p89, %p90
      %p93 = scmp.ne.s32.totalorder %s78, %s92
      %p94 = scmp.eq.s32.totalorder %s21, 0
      %p95 = por %p93, %p94
      %p96 = scmp.le.s32.totalorder 1, %s15
      %p97 = scmp.lt.s32.totalorder %s15, 3
      %p98 = pnand %p96, %p97
      %p99 = pneg %p98
      // Predicated region
      $region9: #{focal_loss.1} parent=5 // pred_check
        _
      $region10: #{focal_loss.1} parent=5 // pred_check_branch
        %101 = sbr.rel (%p98) target = $region12
      $region11: #{focal_loss.1} parent=5 // pred_region
        %s102 = ssub.s32 %s15, 1
      $region12: #{focal_loss.1} parent=5 // pred_fallthru
        _
      %p103 = scmp.lt.s32.totalorder %s15, 2
      // Predicated region
      $region13: #{focal_loss.1} parent=5 // pred_check
        %p104 = pneg %p103
      $region14: #{focal_loss.1} parent=5 // pred_check_branch
        %106 = sbr.rel (%p104) target = $region16
      $region15: #{focal_loss.1} parent=5 // pred_region
        // Predicated region
        $region17: #{focal_loss.1} parent=15 // pred_check
          %p107 = pneg %p35
        $region18: #{focal_loss.1} parent=15 // pred_check_branch
          %109 = sbr.rel (%p107) target = $region20
        $region19: #{focal_loss.1} parent=15 // pred_region
          %s110 = sand.u32 %s25, 1
          %s111 = scalar_lea.sflag [#allocation3], %s110
          %s112 = sand.u32 %s25, 1
          %s113 = smul.addr %s112, 8
          %s114 = scalar_lea.vmem [#allocation2], %s113
          %s116 = ssub.s32 128, 128
          %117 = vsyncadd %s111, %s116
          %s118 = smul.addr %s15, 128
          %s119 = scalar_lea.hbm %s0, %s118
          %s121 = sshll.u32 %s114, 4
          %s122 = int_to_ptr.vmem [resolvable:$true] %s121
          %124 = dma.hbm_to_vmem [thread:$0]  %s119, 128, %s122, %s111
        $region20: #{focal_loss.1} parent=15 // pred_fallthru
          _
        // Predicated region
        $region21: #{focal_loss.1} parent=15 // pred_check
          %p125 = pneg %p61
        $region22: #{focal_loss.1} parent=15 // pred_check_branch
          %127 = sbr.rel (%p125) target = $region24
        $region23: #{focal_loss.1} parent=15 // pred_region
          %s128 = sand.u32 %s51, 1
          %s129 = scalar_lea.sflag [#allocation6], %s128
          %s130 = sand.u32 %s51, 1
          %s131 = smul.addr %s130, 8
          %s132 = scalar_lea.vmem [#allocation5], %s131
          %s134 = ssub.s32 128, 128
          %135 = vsyncadd %s129, %s134
          %s136 = smul.addr %s15, 128
          %s137 = scalar_lea.hbm %s1, %s136
          %s139 = sshll.u32 %s132, 4
          %s140 = int_to_ptr.vmem [resolvable:$true] %s139
          %142 = dma.hbm_to_vmem [thread:$0]  %s137, 128, %s140, %s129
        $region24: #{focal_loss.1} parent=15 // pred_fallthru
          _
      $region16: #{focal_loss.1} parent=5 // pred_fallthru
        _
      %p143 = scmp.le.s32.totalorder 1, %s15
      %p144 = scmp.lt.s32.totalorder %s15, 3
      %p145 = pnand %p143, %p144
      %p146 = pneg %p145
      // Predicated region
      $region25: #{focal_loss.1} parent=5 // pred_check
        _
      $region26: #{focal_loss.1} parent=5 // pred_check_branch
        %148 = sbr.rel (%p145) target = $region28
      $region27: #{focal_loss.1} parent=5 // pred_region
        %s149 = ssub.s32 %s15, 1
        %s150 = sand.u32 %s28, 1
        %s151 = scalar_lea.sflag [#allocation3], %s150
        %s152 = sand.u32 %s28, 1
        %s153 = smul.addr %s152, 8
        %s154 = scalar_lea.vmem [#allocation2], %s153
        // Predicated region
        $region29: #{focal_loss.1} parent=27 // pred_check
          %p155 = pneg %p41
        $region30: #{focal_loss.1} parent=27 // pred_check_branch
          %157 = sbr.rel (%p155) target = $region32
        $region31: #{focal_loss.1} parent=27 // pred_region
          %158 = dma.done %s151, 128
        $region32: #{focal_loss.1} parent=27 // pred_fallthru
          _
        %s159 = sand.u32 %s54, 1
        %s160 = scalar_lea.sflag [#allocation6], %s159
        %s161 = sand.u32 %s54, 1
        %s162 = smul.addr %s161, 8
        %s163 = scalar_lea.vmem [#allocation5], %s162
        // Predicated region
        $region33: #{focal_loss.1} parent=27 // pred_check
          %p164 = pneg %p67
        $region34: #{focal_loss.1} parent=27 // pred_check_branch
          %166 = sbr.rel (%p164) target = $region36
        $region35: #{focal_loss.1} parent=27 // pred_region
          %167 = dma.done %s160, 128
        $region36: #{focal_loss.1} parent=27 // pred_fallthru
          _
        %s168 = sand.u32 %s28, 1
        %s169 = scalar_lea.sflag [#allocation3], %s168
        %s170 = sand.u32 %s28, 1
        %s171 = smul.addr %s170, 8
        %s172 = scalar_lea.vmem [#allocation2], %s171
        %p173 = pneg %p41
        %p174 = pneg %p38
        %s175 = sand.u32 %s54, 1
        %s176 = scalar_lea.sflag [#allocation6], %s175
        %s177 = sand.u32 %s54, 1
        %s178 = smul.addr %s177, 8
        %s179 = scalar_lea.vmem [#allocation5], %s178
        %p180 = pneg %p67
        %p181 = pneg %p64
        %p182 = pneg %p88
        %p183 = pneg %p85
        %p184 = scmp.eq.s32.totalorder %s20, 0
        // Predicated region
        $region37: #{focal_loss.1} parent=27 // pred_check
          %p185 = pneg %p184
        $region38: #{focal_loss.1} parent=27 // pred_check_branch
          %187 = sbr.rel (%p185) target = $region40
        $region39: #{focal_loss.1} parent=27 // pred_region
          %vm188 = vcmask 0
          %189 = vst.msk [vmem:[#allocation7] sm:$0x1] %vm188, 0.0
        $region40: #{focal_loss.1} parent=27 // pred_fallthru
          _
        %v190 = vld [vmem:[%s154] sm:$0xff]
        %v191 = vld [vmem:[%s163] sm:$0xff]
        %vm192 = vcmask 261120
        %v193 = vsel %vm192, %v190, -inf
        %194 = vmax.xlane.f32.xlu0 %v193
        %v195 = vpop.xlane.xlu0 %194
        %v196 = vsub.f32 %v190, %v195
        %v197 = vmul.f32 %v196, 1.442695
        %v198 = vpow.pop %v197
        %v199 = vsel %vm192, %v198, 0.0
        %200 = vadd.xlane.f32.xlu0 %v199
        %v201 = vpop.xlane.xlu0 %200
        %v202 = vrcp.pop %v201
        %v203 = vmul.f32 1.0, %v202
        %v204 = vlog2.pop %v201
        %v205 = vmul.f32 %v204, 0.6931472
        %v206 = vmul.f32 %v198, %v203
        %v207 = vmax.f32 %v206, 1e-07
        %v208 = vmin.f32 %v207, 0.9999999
        %v209 = vsub.f32 %v196, %v205
        %v210 = vmax.f32 %v209, -16.118095
        %v211 = vmin.f32 %v210, -1.0000001e-07
        %v212 = vsub.f32 1.0, %v208
        %v213 = vmul.f32 %v212, %v212
        %v214 = vsub.f32 0.0, %v191
        %v215 = vmul.f32 %v214, %v211
        %v216 = vmul.f32 %v215, %v213
        %v217 = vsel %vm192, %v216, 0.0
        %218 = vadd.xlane.f32.xlu0 %v217
        %v219 = vpop.xlane.xlu0 %218
        %v220 = vld [vmem:[#allocation7] sm:$0x1]
        %v221 = vrot.slane %v219, 4
        %v222 = vadd.f32 %v219, %v221
        %v223 = vrot.slane %v222, 2
        %v224 = vadd.f32 %v222, %v223
        %v225 = vrot.slane %v224, 1
        %v226 = vadd.f32 %v224, %v225
        %v227 = vadd.f32 %v220, %v226
        %vm228 = vcmask 0
        %229 = vst.msk [vmem:[#allocation7] sm:$0x1] %vm228, %v227
        // Predicated region
        $region41: #{focal_loss.1} parent=27 // pred_check
          %p230 = pneg %p85
        $region42: #{focal_loss.1} parent=27 // pred_check_branch
          %232 = sbr.rel (%p230) target = $region44
        $region43: #{focal_loss.1} parent=27 // pred_region
          %s234 = ssub.s32 16, 16
          %235 = vsyncadd [#allocation4], %s234
          %s237 = sshll.u32 [#allocation7], 4
          %s238 = int_to_ptr.vmem [resolvable:$true] %s237
          %240 = dma.vmem_to_hbm [thread:$0]  %s238, 16, %s2, [#allocation4]
        $region44: #{focal_loss.1} parent=27 // pred_fallthru
          _
        // Predicated region
        $region45: #{focal_loss.1} parent=27 // pred_check
          %p241 = pneg %p85
        $region46: #{focal_loss.1} parent=27 // pred_check_branch
          %243 = sbr.rel (%p241) target = $region48
        $region47: #{focal_loss.1} parent=27 // pred_region
          %244 = dma.done [#allocation4], 16
        $region48: #{focal_loss.1} parent=27 // pred_fallthru
          _
      $region28: #{focal_loss.1} parent=5 // pred_fallthru
        _
      %p245 = scmp.le.s32.totalorder 2, %s15
      // Predicated region
      $region49: #{focal_loss.1} parent=5 // pred_check
        %p246 = pneg %p245
      $region50: #{focal_loss.1} parent=5 // pred_check_branch
        %248 = sbr.rel (%p246) target = $region52
      $region51: #{focal_loss.1} parent=5 // pred_region
        %s249 = ssub.s32 %s15, 2
      $region52: #{focal_loss.1} parent=5 // pred_fallthru
        _
    $region6: #{focal_loss.1} parent=1 // loop_footer
      %s19 = sadd.s32 1, %s15
    $region7: #{focal_loss.1} parent=1 // loop_footer_branch
      %14 = sbr.rel target = $region3
    $region8: #{focal_loss.1} parent=1 // loop_exit
      _
    %250 = vsyncpa [#allocation3], 1
    %s251 = scalar_lea.sflag [#allocation3], 1
    %252 = vsyncpa %s251, 1
    %253 = vsyncpa [#allocation6], 1
    %s254 = scalar_lea.sflag [#allocation6], 1
    %255 = vsyncpa %s254, 1
    %256 = vsyncpa [#allocation4], 1
    %s257 = scalar_lea.sflag [#allocation4], 1
    %258 = vsyncpa %s257, 1

</llo_original>
